<compile_context>
chip_gen: v7x
topology: tpu7x:2x2x1
jax: 0.10.0
libtpu: 0.0.40
codegen_flags: <defaults>
</compile_context>

<pallas_src>
import numpy as np
import jax
import jax.numpy as jnp
from jax import lax
from jax.experimental import pallas as pl
from jax.experimental.pallas import tpu as pltpu


_ACC_VREG_BUDGET = 24      # f32 vregs the accumulator may occupy across the k-loop
_UNROLL_FULL_MAX = 32      # fully unroll the stacked-channel loop up to this length


def _round_up(x, m):
    return ((x + m - 1) // m) * m


def _vmem_budget_bytes():
    """~0.75x per-core VMEM: ~96 MiB on v5e/v6e (128 MiB), ~48 MiB on v7x (64 MiB)."""
    try:
        cap = int(pltpu.get_tpu_info().vmem_capacity_bytes)
    except Exception:
        cap = 64 << 20          # conservative fallback
    return (3 * cap) // 4


# ----------------------------------------------------------------------------
# Pallas kernel: stacked real contraction over channels (== complex mixing)
# ----------------------------------------------------------------------------
def spectral_mul_kernel(z_ref, w_ref, o_ref):
    """out[b, j, p] = sum_k z[b, k, p] * w[k, j, p], accumulated in f32.

    Tiles (one grid step):
      z_ref : (BT, C2, PT)  operand dtype (f32 or bf16); C2 = 2*channels
      w_ref : (C2, C2, PT)  operand dtype
      o_ref : (BT, C2, PT)  float32

    The channel axis already carries [real; imag] stacked and w is the real
    block matrix [[Wr, Wi], [-Wi, Wr]], so this single real contraction is the
    complex channel mixing.  f32 path: per-iteration *ref* reads bound live
    ranges (no whole-tile value load) and the accumulator stays in vregs.
    bf16 path: tiles are upcast to f32 once in VMEM (v5e-safe), then sliced.
    """
    c2 = w_ref.shape[0]
    packed = z_ref.dtype != jnp.float32

    if packed:
        # Sub-32-bit operands: upcast once, then slice 32-bit values (robust
        # single-sublane slicing; upcast cost hides under the tile DMA).
        z32 = z_ref[...].astype(jnp.float32)
        w32 = w_ref[...].astype(jnp.float32)

    def z_k(k):
        if packed:
            return lax.dynamic_slice_in_dim(z32, k, 1, axis=1)   # (BT, 1, PT)
        return z_ref[:, pl.ds(k, 1), :]                          # (BT, 1, PT)

    def w_k(k):
        if packed:
            return lax.dynamic_slice_in_dim(w32, k, 1, axis=0)   # (1, C2, PT)
        return w_ref[pl.ds(k, 1), :, :]                          # (1, C2, PT)

    acc = jnp.zeros(o_ref.shape, jnp.float32)
    if c2 <= _UNROLL_FULL_MAX:
        for k in range(c2):
            acc = acc + z_k(k) * w_k(k)
    else:
        # TODO(synk): at C >= ~16-32 the contraction should move to the MXU
        # (four real matmuls per mode block) and/or tile the output-channel
        # axis j; the VPU loop below stays correct but becomes compute-bound.
        def body(k, a):
            return a + z_k(k) * w_k(k)
        acc = lax.fori_loop(0, c2, body, acc, unroll=8)

    o_ref[...] = acc


# ----------------------------------------------------------------------------
# Tile selection + pallas_call wrapper
# ----------------------------------------------------------------------------
def _choose_pt(P, C2, esize_w, vmem_budget):
    """Largest lane tile (multiple of 128) compatible with the accumulator-vreg
    budget and a double-buffered weight tile using at most half the VMEM budget."""
    p_lane = _round_up(P, 128)
    sub = -(-C2 // 8)
    for cand in (1024, 512, 256, 128):
        if cand > p_lane:
            continue
        if sub * (cand // 128) > _ACC_VREG_BUDGET:
            continue                      # even BT=1 would spill the accumulator
        if 2 * C2 * C2 * cand * esize_w > vmem_budget // 2:
            continue                      # leave room for z/out tiles
        return cand
    # TODO(synk): for very large C2 even PT=128 exceeds the vreg budget; tile
    # the output-channel axis j (extra grid axis) before falling back here.
    return 128


def _choose_bt(B, C2, PT, esize, vmem_budget):
    sub = -(-C2 // 8)
    acc_cap = max(1, _ACC_VREG_BUDGET // (sub * (PT // 128)))
    per_bt = 2 * PT * C2 * (esize + 4)                 # dbl-buffered z + f32 out per row
    fixed = 2 * C2 * C2 * PT * esize + (4 << 20)       # dbl-buffered weights + headroom
    vm_cap = max(1, (vmem_budget - fixed) // per_bt)
    bt_cap = int(min(32, acc_cap, vm_cap, B))
    # Prefer a BT that divides B (no padded batch rows of DMA + compute).
    for d in range(bt_cap, 0, -1):
        if B % d == 0:
            if d >= (bt_cap + 1) // 2:
                return d
            break
    return bt_cap


def _pallas_spectral_mul(z_stacked, w_padded, PT, vmem_budget):
    """z_stacked: (B, C2, P); w_padded: (C2, C2, Ppad) -> (B, C2, P) float32."""
    B, C2, P = z_stacked.shape
    Ppad = w_padded.shape[-1]
    esize = z_stacked.dtype.itemsize

    BT = _choose_bt(B, C2, PT, esize, vmem_budget)
    Bpad = _round_up(B, BT)

    if (Bpad, Ppad) != (B, P):
        z_stacked = jnp.pad(z_stacked, ((0, Bpad - B), (0, 0), (0, Ppad - P)))

    # P tiles outermost: the weight block index depends only on the P tile, so
    # the weight tile stays resident while the batch axis iterates.  On v7x
    # either "parallel" axis may carry the megacore split; at realistic sizes
    # there are >= 2 P tiles so the split can avoid duplicating weight DMA.
    grid = (Ppad // PT, Bpad // BT)

    z_spec = pl.BlockSpec((BT, C2, PT), lambda pi, bi: (bi, 0, pi))
    w_spec = pl.BlockSpec((C2, C2, PT), lambda pi, bi: (0, 0, pi))
    o_spec = pl.BlockSpec((BT, C2, PT), lambda pi, bi: (bi, 0, pi))

    # Double-buffered per-step footprint: z + w + out tiles.
    step_bytes = 2 * PT * (BT * C2 * esize + C2 * C2 * esize + BT * C2 * 4)
    vmem_limit = int(min(vmem_budget, max(16 << 20, 2 * step_bytes)))

    out = pl.pallas_call(
        spectral_mul_kernel,
        out_shape=jax.ShapeDtypeStruct((Bpad, C2, Ppad), jnp.float32),
        grid=grid,
        in_specs=[z_spec, w_spec],
        out_specs=o_spec,
        compiler_params=pltpu.CompilerParams(
            dimension_semantics=("parallel", "parallel"),
            vmem_limit_bytes=vmem_limit),
    )(z_stacked, w_padded)

    return out[:B, :, :P]


# ----------------------------------------------------------------------------
# Forward (FFT glue + Pallas hot path), jitted
# ----------------------------------------------------------------------------
def _spectral_conv_forward(z, w_pad, m1, m2, PT, vmem_budget, op_dtype):
    B, C, Nx, Nt = z.shape
    h1, h2 = m1 // 2, m2 // 2
    even_dims = (Nx % 2 == 0) and (Nt % 2 == 0)

    # --- glue: forward FFT; select retained centered modes straight from the
    # un-shifted spectrum's four corners (== fftshift + centered slice without
    # two full-array roll copies).  Exact fallback for odd dims.
    # TODO(synk): a real-input rfftn path would halve FFT flops/bytes but needs
    # Hermitian reconstruction of the negative-frequency retained modes.
    z_ft = jnp.fft.fftn(z.astype(jnp.complex64), axes=(2, 3))
    if even_dims:
        rows = jnp.concatenate([z_ft[:, :, Nx - h1:, :], z_ft[:, :, :h1, :]], axis=2)
        sel = jnp.concatenate([rows[:, :, :, Nt - h2:], rows[:, :, :, :h2]], axis=3)
    else:
        z_ft_s = jnp.fft.fftshift(z_ft, axes=(2, 3))
        c0, c1 = Nx // 2 - h1, Nt // 2 - h2
        sel = z_ft_s[:, :, c0:c0 + m1, c1:c1 + m2]

    # --- hot path: complex channel mixing over retained modes, in Pallas ---
    P = m1 * m2
    zr = jnp.real(sel).reshape(B, C, P)
    zi = jnp.imag(sel).reshape(B, C, P)
    z_stacked = jnp.concatenate([zr, zi], axis=1).astype(op_dtype)   # (B, 2C, P)
    o = _pallas_spectral_mul(z_stacked, w_pad, PT, vmem_budget)      # (B, 2C, P) f32
    out_sel = (o[:, :C, :] + 1j * o[:, C:, :]).reshape(B, C, m1, m2)

    # --- glue: scatter mixed modes back (corner scatter == centered + ifftshift)
    out_ft = jnp.zeros((B, C, Nx, Nt), dtype=jnp.complex64)
    if even_dims:
        out_ft = out_ft.at[:, :, Nx - h1:, Nt - h2:].set(out_sel[:, :, :h1, :h2])
        out_ft = out_ft.at[:, :, Nx - h1:, :h2].set(out_sel[:, :, :h1, h2:])
        out_ft = out_ft.at[:, :, :h1, Nt - h2:].set(out_sel[:, :, h1:, :h2])
        out_ft = out_ft.at[:, :, :h1, :h2].set(out_sel[:, :, h1:, h2:])
    else:
        c0, c1 = Nx // 2 - h1, Nt // 2 - h2
        out_ft = out_ft.at[:, :, c0:c0 + m1, c1:c1 + m2].set(out_sel)
        out_ft = jnp.fft.ifftshift(out_ft, axes=(2, 3))

    z_out = jnp.fft.ifftn(out_ft, axes=(2, 3))
    return jnp.real(z_out).astype(jnp.float32)


class KernelConvolutionPallas:
    """JAX/Pallas port of KernelConvolution (2D case: modes = [modes1, modes2])."""

    def __init__(self, channels, modes1, modes2, key, operand_dtype=jnp.float32):
        # Odd mode counts would also shape-error in the original PyTorch module.
        assert modes1 % 2 == 0 and modes2 % 2 == 0, "only even mode counts supported"
        self.channels = channels
        self.modes = [modes1, modes2]
        self.dims = (2, 3)
        scale = 1.0 / channels ** 2
        k_re, k_im = jax.random.split(key)
        # torch.rand with dtype=cfloat draws real and imag parts each ~ U[0, 1)
        w_re = scale * jax.random.uniform(
            k_re, (channels, channels, modes1, modes2), dtype=jnp.float32)
        w_im = scale * jax.random.uniform(
            k_im, (channels, channels, modes1, modes2), dtype=jnp.float32)
        self.weights = w_re + 1j * w_im          # complex64, matches the torch parameter

        # --- precompute the kernel weight operand ONCE (no per-call pad/cast) ---
        # Complex mixing rewritten as a single real contraction over stacked
        # channels [zr; zi] with the (2C, 2C) block matrix [[Wr, Wi], [-Wi, Wr]]:
        #   out_r[j] = sum_i zr[i] Wr[i,j] - zi[i] Wi[i,j]
        #   out_i[j] = sum_i zr[i] Wi[i,j] + zi[i] Wr[i,j]
        C = channels
        P = modes1 * modes2
        wr = w_re.reshape(C, C, P)
        wi = w_im.reshape(C, C, P)
        w_stacked = jnp.concatenate(
            [jnp.concatenate([wr, wi], axis=1),
             jnp.concatenate([-wi, wr], axis=1)], axis=0)        # (2C, 2C, P)

        self.operand_dtype = np.dtype(operand_dtype)
        esize = self.operand_dtype.itemsize
        self._vmem_budget = _vmem_budget_bytes()
        self._pt = _choose_pt(P, 2 * C, esize, self._vmem_budget)
        ppad = _round_up(P, self._pt)
        self.w_pad = jnp.pad(
            w_stacked, ((0, 0), (0, 0), (0, ppad - P))).astype(self.operand_dtype)

        m1, m2, pt = modes1, modes2, self._pt
        budget, op_dtype = self._vmem_budget, self.operand_dtype

        @jax.jit
        def _forward(z, w_pad):
            return _spectral_conv_forward(z, w_pad, m1, m2, pt, budget, op_dtype)

        self._forward = _forward

        # TODO(synk): forward_init (init=True, time-domain kernel) and the
        # 3D-modes (modes3) branch are not ported; only the default 2D forward
        # (init=False) — the module's hot path — is implemented.

    def __call__(self, z):
        """z: (batch, channels, dim_x, dim_t) real float32 -> same shape, real."""
        return self._forward(z, self.w_pad)


def _reference_forward(module, z):
    """Pure-JAX reference replicating the PyTorch forward (init=False)."""
    B, C, Nx, Nt = z.shape
    m1, m2 = module.modes
    f0 = (Nx // 2 - m1 // 2, Nx // 2 + m1 // 2)
    f1 = (Nt // 2 - m2 // 2, Nt // 2 + m2 // 2)
    z_ft = jnp.fft.fftshift(jnp.fft.fftn(z.astype(jnp.complex64), axes=(2, 3)), axes=(2, 3))
    sel = z_ft[:, :, f0[0]:f0[1], f1[0]:f1[1]]
    mixed = jnp.einsum('bixt,ijxt->bjxt', sel, module.weights)
    out_ft = jnp.zeros((B, C, Nx, Nt), dtype=jnp.complex64)
    out_ft = out_ft.at[:, :, f0[0]:f0[1], f1[0]:f1[1]].set(mixed)
    out_ft = jnp.fft.ifftshift(out_ft, axes=(2, 3))
    return jnp.real(jnp.fft.ifftn(out_ft, axes=(2, 3))).astype(jnp.float32)


if __name__ == "__main__":
    key = jax.random.PRNGKey(0)
    k_w, k_x = jax.random.split(key)

    batch, channels, dim_x, dim_t = 2, 4, 16, 16
    modes1, modes2 = 8, 8

    z = jax.random.normal(k_x, (batch, channels, dim_x, dim_t), dtype=jnp.float32)

    # f32 operands: faithful to the module's complex64 arithmetic.
    module = KernelConvolutionPallas(channels, modes1, modes2, k_w)
    out = jax.block_until_ready(module(z))
    ref = jax.block_until_ready(_reference_forward(module, z))
    np.testing.assert_allclose(np.asarray(out), np.asarray(ref), rtol=1e-4, atol=1e-5)

    # bf16 operands (f32 accumulation): the memory-bound fast path from the
    # review; tolerance reflects input quantization only.
    module_bf16 = KernelConvolutionPallas(channels, modes1, modes2, k_w,
                                          operand_dtype=jnp.bfloat16)
    out_bf16 = jax.block_until_ready(module_bf16(z))
    tol = 0.05 * float(np.abs(np.asarray(ref)).max())
    np.testing.assert_allclose(np.asarray(out_bf16), np.asarray(ref), rtol=0.0, atol=tol)

    print("KERNEL_OK")
</pallas_src>

<mosaic_0001>
module attributes {stable_mosaic.version = 11 : i64} {
  func.func @spectral_mul_kernel(%arg0: i32, %arg1: i32, %arg2: memref<2x8x128xf32, #tpu.memory_space<vmem>>, %arg3: memref<8x8x128xf32, #tpu.memory_space<vmem>>, %arg4: memref<2x8x128xf32, #tpu.memory_space<vmem>>) attributes {dimension_semantics = [#tpu.dimension_semantics<parallel>, #tpu.dimension_semantics<parallel>], iteration_bounds = array<i64: 1, 1>, scalar_prefetch = 0 : i64, scratch_operands = 0 : i64, tpu.core_type = #tpu.core_type<tc>, window_params = [{transform_indices = @transform_0, window_bounds = array<i64: 2, 8, 128>}, {transform_indices = @transform_1, window_bounds = array<i64: 8, 8, 128>}, {transform_indices = @transform_2, window_bounds = array<i64: 2, 8, 128>}]} {
    %cst = arith.constant 0.000000e+00 : f32
    %0 = vector.broadcast %cst : f32 to vector<2x8x128xf32>
    %c0 = arith.constant 0 : index
    %c0_0 = arith.constant 0 : index
    %c0_1 = arith.constant 0 : index
    %1 = vector.load %arg2[%c0, %c0_0, %c0_1] : memref<2x8x128xf32, #tpu.memory_space<vmem>>, vector<2x1x128xf32>
    %c0_2 = arith.constant 0 : index
    %c0_3 = arith.constant 0 : index
    %c0_4 = arith.constant 0 : index
    %2 = vector.load %arg3[%c0_2, %c0_3, %c0_4] : memref<8x8x128xf32, #tpu.memory_space<vmem>>, vector<1x8x128xf32>
    %3 = vector.broadcast %1 : vector<2x1x128xf32> to vector<2x8x128xf32>
    %4 = vector.broadcast %2 : vector<1x8x128xf32> to vector<2x8x128xf32>
    %5 = arith.mulf %3, %4 : vector<2x8x128xf32>
    %6 = arith.addf %0, %5 : vector<2x8x128xf32>
    %c0_5 = arith.constant 0 : index
    %c1 = arith.constant 1 : index
    %c0_6 = arith.constant 0 : index
    %7 = vector.load %arg2[%c0_5, %c1, %c0_6] : memref<2x8x128xf32, #tpu.memory_space<vmem>>, vector<2x1x128xf32>
    %c1_7 = arith.constant 1 : index
    %c0_8 = arith.constant 0 : index
    %c0_9 = arith.constant 0 : index
    %8 = vector.load %arg3[%c1_7, %c0_8, %c0_9] : memref<8x8x128xf32, #tpu.memory_space<vmem>>, vector<1x8x128xf32>
    %9 = vector.broadcast %7 : vector<2x1x128xf32> to vector<2x8x128xf32>
    %10 = vector.broadcast %8 : vector<1x8x128xf32> to vector<2x8x128xf32>
    %11 = arith.mulf %9, %10 : vector<2x8x128xf32>
    %12 = arith.addf %6, %11 : vector<2x8x128xf32>
    %c0_10 = arith.constant 0 : index
    %c2 = arith.constant 2 : index
    %c0_11 = arith.constant 0 : index
    %13 = vector.load %arg2[%c0_10, %c2, %c0_11] : memref<2x8x128xf32, #tpu.memory_space<vmem>>, vector<2x1x128xf32>
    %c2_12 = arith.constant 2 : index
    %c0_13 = arith.constant 0 : index
    %c0_14 = arith.constant 0 : index
    %14 = vector.load %arg3[%c2_12, %c0_13, %c0_14] : memref<8x8x128xf32, #tpu.memory_space<vmem>>, vector<1x8x128xf32>
    %15 = vector.broadcast %13 : vector<2x1x128xf32> to vector<2x8x128xf32>
    %16 = vector.broadcast %14 : vector<1x8x128xf32> to vector<2x8x128xf32>
    %17 = arith.mulf %15, %16 : vector<2x8x128xf32>
    %18 = arith.addf %12, %17 : vector<2x8x128xf32>
    %c0_15 = arith.constant 0 : index
    %c3 = arith.constant 3 : index
    %c0_16 = arith.constant 0 : index
    %19 = vector.load %arg2[%c0_15, %c3, %c0_16] : memref<2x8x128xf32, #tpu.memory_space<vmem>>, vector<2x1x128xf32>
    %c3_17 = arith.constant 3 : index
    %c0_18 = arith.constant 0 : index
    %c0_19 = arith.constant 0 : index
    %20 = vector.load %arg3[%c3_17, %c0_18, %c0_19] : memref<8x8x128xf32, #tpu.memory_space<vmem>>, vector<1x8x128xf32>
    %21 = vector.broadcast %19 : vector<2x1x128xf32> to vector<2x8x128xf32>
    %22 = vector.broadcast %20 : vector<1x8x128xf32> to vector<2x8x128xf32>
    %23 = arith.mulf %21, %22 : vector<2x8x128xf32>
    %24 = arith.addf %18, %23 : vector<2x8x128xf32>
    %c0_20 = arith.constant 0 : index
    %c4 = arith.constant 4 : index
    %c0_21 = arith.constant 0 : index
    %25 = vector.load %arg2[%c0_20, %c4, %c0_21] : memref<2x8x128xf32, #tpu.memory_space<vmem>>, vector<2x1x128xf32>
    %c4_22 = arith.constant 4 : index
    %c0_23 = arith.constant 0 : index
    %c0_24 = arith.constant 0 : index
    %26 = vector.load %arg3[%c4_22, %c0_23, %c0_24] : memref<8x8x128xf32, #tpu.memory_space<vmem>>, vector<1x8x128xf32>
    %27 = vector.broadcast %25 : vector<2x1x128xf32> to vector<2x8x128xf32>
    %28 = vector.broadcast %26 : vector<1x8x128xf32> to vector<2x8x128xf32>
    %29 = arith.mulf %27, %28 : vector<2x8x128xf32>
    %30 = arith.addf %24, %29 : vector<2x8x128xf32>
    %c0_25 = arith.constant 0 : index
    %c5 = arith.constant 5 : index
    %c0_26 = arith.constant 0 : index
    %31 = vector.load %arg2[%c0_25, %c5, %c0_26] : memref<2x8x128xf32, #tpu.memory_space<vmem>>, vector<2x1x128xf32>
    %c5_27 = arith.constant 5 : index
    %c0_28 = arith.constant 0 : index
    %c0_29 = arith.constant 0 : index
    %32 = vector.load %arg3[%c5_27, %c0_28, %c0_29] : memref<8x8x128xf32, #tpu.memory_space<vmem>>, vector<1x8x128xf32>
    %33 = vector.broadcast %31 : vector<2x1x128xf32> to vector<2x8x128xf32>
    %34 = vector.broadcast %32 : vector<1x8x128xf32> to vector<2x8x128xf32>
    %35 = arith.mulf %33, %34 : vector<2x8x128xf32>
    %36 = arith.addf %30, %35 : vector<2x8x128xf32>
    %c0_30 = arith.constant 0 : index
    %c6 = arith.constant 6 : index
    %c0_31 = arith.constant 0 : index
    %37 = vector.load %arg2[%c0_30, %c6, %c0_31] : memref<2x8x128xf32, #tpu.memory_space<vmem>>, vector<2x1x128xf32>
    %c6_32 = arith.constant 6 : index
    %c0_33 = arith.constant 0 : index
    %c0_34 = arith.constant 0 : index
    %38 = vector.load %arg3[%c6_32, %c0_33, %c0_34] : memref<8x8x128xf32, #tpu.memory_space<vmem>>, vector<1x8x128xf32>
    %39 = vector.broadcast %37 : vector<2x1x128xf32> to vector<2x8x128xf32>
    %40 = vector.broadcast %38 : vector<1x8x128xf32> to vector<2x8x128xf32>
    %41 = arith.mulf %39, %40 : vector<2x8x128xf32>
    %42 = arith.addf %36, %41 : vector<2x8x128xf32>
    %c0_35 = arith.constant 0 : index
    %c7 = arith.constant 7 : index
    %c0_36 = arith.constant 0 : index
    %43 = vector.load %arg2[%c0_35, %c7, %c0_36] : memref<2x8x128xf32, #tpu.memory_space<vmem>>, vector<2x1x128xf32>
    %c7_37 = arith.constant 7 : index
    %c0_38 = arith.constant 0 : index
    %c0_39 = arith.constant 0 : index
    %44 = vector.load %arg3[%c7_37, %c0_38, %c0_39] : memref<8x8x128xf32, #tpu.memory_space<vmem>>, vector<1x8x128xf32>
    %45 = vector.broadcast %43 : vector<2x1x128xf32> to vector<2x8x128xf32>
    %46 = vector.broadcast %44 : vector<1x8x128xf32> to vector<2x8x128xf32>
    %47 = arith.mulf %45, %46 : vector<2x8x128xf32>
    %48 = arith.addf %42, %47 : vector<2x8x128xf32>
    %c0_40 = arith.constant 0 : index
    %c0_41 = arith.constant 0 : index
    %c0_42 = arith.constant 0 : index
    %49 = vector.load %arg4[%c0_40, %c0_41, %c0_42] : memref<2x8x128xf32, #tpu.memory_space<vmem>>, vector<2x8x128xf32>
    tpu.vector_store %arg4[%c0_40, %c0_41, %c0_42], %48 {strides = array<i32>} : memref<2x8x128xf32, #tpu.memory_space<vmem>>, vector<2x8x128xf32>,
    return
  }
  func.func @transform_0(%arg0: i32, %arg1: i32) -> (i32, i32, i32) {
    %c0_i32 = arith.constant 0 : i32
    %c0_i32_0 = arith.constant 0 : i32
    return %arg1, %c0_i32, %arg0 : i32, i32, i32
  }
  func.func @transform_1(%arg0: i32, %arg1: i32) -> (i32, i32, i32) {
    %c0_i32 = arith.constant 0 : i32
    %c0_i32_0 = arith.constant 0 : i32
    %c0_i32_1 = arith.constant 0 : i32
    return %c0_i32, %c0_i32_0, %arg0 : i32, i32, i32
  }
  func.func @transform_2(%arg0: i32, %arg1: i32) -> (i32, i32, i32) {
    %c0_i32 = arith.constant 0 : i32
    %c0_i32_0 = arith.constant 0 : i32
    return %arg1, %c0_i32, %arg0 : i32, i32, i32
  }
}

</mosaic_0001>

<llo_original>
// kernel: _forward.1
$region0: #{_forward.1}
  #allocation0 [shape = 'u32[]', space=smem, size = 0x4, offset = 0x4, fixed_abs, tag = 'smem constant byte address 0x4 - core index']
  #allocation1 [shape = 'u32[144,128]{1,0:T(1,128)}', space=vmem, size = 0x12000, scoped, tag = 'internal scratch']
  %s0 = inlined_call_operand.vmem [shape: f32[2,8,128], index: 0, kind: input, shape index: {}]
  %s1 = inlined_call_operand.vmem [shape: f32[8,8,128], index: 1, kind: input, shape index: {}]
  %s2 = inlined_call_operand.vmem [shape: f32[2,8,128], index: 2, kind: output, shape index: {}]
  %s3 = sld [smem:[#allocation0]]
  $region18: #{_forward.1} parent=0
    _
  %s5 = ssub.s32 1, %s3
  %s6 = scalar_select 0, %s5, %s3
  // Predicated region
  $region2: #{_forward.1} parent=0 // pred_check
    _
  $region3: #{_forward.1} parent=0 // pred_check_branch
    %8 = sbr.rel (0) target = $region5
  $region4: #{_forward.1} parent=0 // pred_region
    _
  $region5: #{_forward.1} parent=0 // pred_fallthru
    _
  // Predicated region
  $region6: #{_forward.1} parent=0 // pred_check
    _
  $region7: #{_forward.1} parent=0 // pred_check_branch
    %10 = sbr.rel (0) target = $region9
  $region8: #{_forward.1} parent=0 // pred_region
    _
  $region9: #{_forward.1} parent=0 // pred_fallthru
    _
  %v11 = vld [vmem:[%s0] sm:$0x1]
  %v12 = vld [vmem:[%s0 + $0x8] sm:$0x1]
  %v13 = vld [vmem:[%s1] sm:$0xff]
  %v14 = vlaneseq
  %v15 = vshrl.u32 %v14, 7
  %v16 = vsub.s32 0, %v15
  %v17 = vrot.slane %v11, %v16
  %v18 = vlaneseq
  %v19 = vshrl.u32 %v18, 7
  %v20 = vsub.s32 0, %v19
  %v21 = vrot.slane %v12, %v20
  %v22 = vmul.f32 %v17, %v13
  %v23 = vmul.f32 %v21, %v13
  %v24 = vadd.f32 %v22, 0.0
  %v25 = vadd.f32 %v23, 0.0
  %v26 = vld [vmem:[%s0 + $0x1] sm:$0x1]
  %v27 = vld [vmem:[%s0 + $0x9] sm:$0x1]
  %s28 = scalar_lea.vmem %s1, 8
  %v29 = vld [vmem:[%s28] sm:$0xff]
  %v30 = vlaneseq
  %v31 = vshrl.u32 %v30, 7
  %v32 = vsub.s32 0, %v31
  %v33 = vrot.slane %v26, %v32
  %v34 = vlaneseq
  %v35 = vshrl.u32 %v34, 7
  %v36 = vsub.s32 0, %v35
  %v37 = vrot.slane %v27, %v36
  %v38 = vmul.f32 %v33, %v29
  %v39 = vmul.f32 %v37, %v29
  %v40 = vadd.f32 %v24, %v38
  %v41 = vadd.f32 %v25, %v39
  %v42 = vld [vmem:[%s0 + $0x2] sm:$0x1]
  %v43 = vld [vmem:[%s0 + $0xa] sm:$0x1]
  %s44 = scalar_lea.vmem %s1, 16
  %v45 = vld [vmem:[%s44] sm:$0xff]
  %v46 = vlaneseq
  %v47 = vshrl.u32 %v46, 7
  %v48 = vsub.s32 0, %v47
  %v49 = vrot.slane %v42, %v48
  %v50 = vlaneseq
  %v51 = vshrl.u32 %v50, 7
  %v52 = vsub.s32 0, %v51
  %v53 = vrot.slane %v43, %v52
  %v54 = vmul.f32 %v49, %v45
  %v55 = vmul.f32 %v53, %v45
  %v56 = vadd.f32 %v40, %v54
  %v57 = vadd.f32 %v41, %v55
  %v58 = vld [vmem:[%s0 + $0x3] sm:$0x1]
  %v59 = vld [vmem:[%s0 + $0xb] sm:$0x1]
  %s60 = scalar_lea.vmem %s1, 24
  %v61 = vld [vmem:[%s60] sm:$0xff]
  %v62 = vlaneseq
  %v63 = vshrl.u32 %v62, 7
  %v64 = vsub.s32 0, %v63
  %v65 = vrot.slane %v58, %v64
  %v66 = vlaneseq
  %v67 = vshrl.u32 %v66, 7
  %v68 = vsub.s32 0, %v67
  %v69 = vrot.slane %v59, %v68
  %v70 = vmul.f32 %v65, %v61
  %v71 = vmul.f32 %v69, %v61
  %v72 = vadd.f32 %v56, %v70
  %v73 = vadd.f32 %v57, %v71
  %v74 = vld [vmem:[%s0 + $0x4] sm:$0x1]
  %v75 = vld [vmem:[%s0 + $0xc] sm:$0x1]
  %s76 = scalar_lea.vmem %s1, 32
  %v77 = vld [vmem:[%s76] sm:$0xff]
  %v78 = vlaneseq
  %v79 = vshrl.u32 %v78, 7
  %v80 = vsub.s32 0, %v79
  %v81 = vrot.slane %v74, %v80
  %v82 = vlaneseq
  %v83 = vshrl.u32 %v82, 7
  %v84 = vsub.s32 0, %v83
  %v85 = vrot.slane %v75, %v84
  %v86 = vmul.f32 %v81, %v77
  %v87 = vmul.f32 %v85, %v77
  %v88 = vadd.f32 %v72, %v86
  %v89 = vadd.f32 %v73, %v87
  %v90 = vld [vmem:[%s0 + $0x5] sm:$0x1]
  %v91 = vld [vmem:[%s0 + $0xd] sm:$0x1]
  %s92 = scalar_lea.vmem %s1, 40
  %v93 = vld [vmem:[%s92] sm:$0xff]
  %v94 = vlaneseq
  %v95 = vshrl.u32 %v94, 7
  %v96 = vsub.s32 0, %v95
  %v97 = vrot.slane %v90, %v96
  %v98 = vlaneseq
  %v99 = vshrl.u32 %v98, 7
  %v100 = vsub.s32 0, %v99
  %v101 = vrot.slane %v91, %v100
  %v102 = vmul.f32 %v97, %v93
  %v103 = vmul.f32 %v101, %v93
  %v104 = vadd.f32 %v88, %v102
  %v105 = vadd.f32 %v89, %v103
  %v106 = vld [vmem:[%s0 + $0x6] sm:$0x1]
  %v107 = vld [vmem:[%s0 + $0xe] sm:$0x1]
  %s108 = scalar_lea.vmem %s1, 48
  %v109 = vld [vmem:[%s108] sm:$0xff]
  %v110 = vlaneseq
  %v111 = vshrl.u32 %v110, 7
  %v112 = vsub.s32 0, %v111
  %v113 = vrot.slane %v106, %v112
  %v114 = vlaneseq
  %v115 = vshrl.u32 %v114, 7
  %v116 = vsub.s32 0, %v115
  %v117 = vrot.slane %v107, %v116
  %v118 = vmul.f32 %v113, %v109
  %v119 = vmul.f32 %v117, %v109
  %v120 = vadd.f32 %v104, %v118
  %v121 = vadd.f32 %v105, %v119
  %v122 = vld [vmem:[%s0 + $0x7] sm:$0x1]
  %v123 = vld [vmem:[%s0 + $0xf] sm:$0x1]
  %s124 = scalar_lea.vmem %s1, 56
  %v125 = vld [vmem:[%s124] sm:$0xff]
  %v126 = vlaneseq
  %v127 = vshrl.u32 %v126, 7
  %v128 = vsub.s32 0, %v127
  %v129 = vrot.slane %v122, %v128
  %v130 = vlaneseq
  %v131 = vshrl.u32 %v130, 7
  %v132 = vsub.s32 0, %v131
  %v133 = vrot.slane %v123, %v132
  %v134 = vmul.f32 %v129, %v125
  %v135 = vmul.f32 %v133, %v125
  %v136 = vadd.f32 %v120, %v134
  %v137 = vadd.f32 %v121, %v135
  %138 = vst [vmem:[%s2] sm:$0xff] %v136
  %139 = vst [vmem:[%s2 + $0x8] sm:$0xff] %v137
  // Predicated region
  $region10: #{_forward.1} parent=0 // pred_check
    _
  $region11: #{_forward.1} parent=0 // pred_check_branch
    %141 = sbr.rel (0) target = $region13
  $region12: #{_forward.1} parent=0 // pred_region
    _
  $region13: #{_forward.1} parent=0 // pred_fallthru
    _
  // Predicated region
  $region14: #{_forward.1} parent=0 // pred_check
    _
  $region15: #{_forward.1} parent=0 // pred_check_branch
    %143 = sbr.rel (0) target = $region17
  $region16: #{_forward.1} parent=0 // pred_region
    _
  $region17: #{_forward.1} parent=0 // pred_fallthru
    _

</llo_original>
